<compile_context>
chip_gen: v6e
topology: v6e:2x2x1
jax: 0.10.0
libtpu: 0.0.40
codegen_flags: <defaults>
</compile_context>

<pallas_src>
import functools

import jax
import jax.numpy as jnp
from jax.experimental import pallas as pl
from jax.experimental.pallas import tpu as pltpu

_NUM_CORE_SPLITS = 2                  # leading "parallel" grid axis (v7x megacore)
_F32_BLOCK_BYTES = 2 * 1024 * 1024    # ~2 MiB per f32 input block; fits every chip's
                                      # default scoped VMEM even double-buffered x3 inputs


def _pick_tile_rows(n_rows, n_cols):
    """Rows per block: as many as ~_F32_BLOCK_BYTES allows, multiple of 32 (int8-safe
    sublane tiling), or the full row count for small inputs (full dims always legal)."""
    rows = _F32_BLOCK_BYTES // max(1, n_cols * 4)
    rows = max(32, (rows // 32) * 32)
    if rows >= n_rows:
        return n_rows
    return rows


# ---------------------------------------------------------------------------
# Kernels
# ---------------------------------------------------------------------------
def _sse_kernel(p_ref, g_ref, o_ref, acc_ref, *, n_rows, tile_rows, tiles_per_core):
    c = pl.program_id(0)
    i = pl.program_id(1)

    @pl.when(i == 0)
    def _():
        acc_ref[...] = jnp.zeros_like(acc_ref)

    # Global row indices covered by this (possibly clamped / partial) block.
    row0 = (c * tiles_per_core + i) * tile_rows
    rows = jax.lax.broadcasted_iota(jnp.int32, (tile_rows, 1), 0) + row0
    in_range = rows < n_rows                     # (tile_rows, 1) bool

    d = p_ref[...].astype(jnp.float32) - g_ref[...].astype(jnp.float32)
    contrib = jnp.where(in_range, d * d, 0.0)    # mask tail rows (garbage-safe select)
    acc_ref[...] += jnp.sum(contrib, axis=0, keepdims=True)

    @pl.when(i == pl.num_programs(1) - 1)
    def _():
        total = jnp.sum(acc_ref[...])
        o_ref[...] = jnp.broadcast_to(total, (1, 1, 128))


def _masked_sse_kernel(p_ref, g_ref, v_ref, num_ref, den_ref, nacc_ref, dacc_ref, *,
                       n_rows, tile_rows, tiles_per_core):
    c = pl.program_id(0)
    i = pl.program_id(1)

    @pl.when(i == 0)
    def _():
        nacc_ref[...] = jnp.zeros_like(nacc_ref)
        dacc_ref[...] = jnp.zeros_like(dacc_ref)

    row0 = (c * tiles_per_core + i) * tile_rows
    rows = jax.lax.broadcasted_iota(jnp.int32, (tile_rows, 1), 0) + row0
    in_range = rows < n_rows                     # (tile_rows, 1) bool

    d = p_ref[...].astype(jnp.float32) - g_ref[...].astype(jnp.float32)
    valid = jnp.logical_and(in_range, v_ref[...] != 0)   # (tile_rows, W) bool
    nacc_ref[...] += jnp.sum(jnp.where(valid, d * d, 0.0), axis=0, keepdims=True)
    dacc_ref[...] += jnp.sum(jnp.where(valid, 1.0, 0.0), axis=0, keepdims=True)

    @pl.when(i == pl.num_programs(1) - 1)
    def _():
        num_ref[...] = jnp.broadcast_to(jnp.sum(nacc_ref[...]), (1, 1, 128))
        den_ref[...] = jnp.broadcast_to(jnp.sum(dacc_ref[...]), (1, 1, 128))


# ---------------------------------------------------------------------------
# Pallas wrappers
# ---------------------------------------------------------------------------
def _grid_setup(n_rows, n_cols):
    tile_rows = _pick_tile_rows(n_rows, n_cols)
    num_tiles = pl.cdiv(n_rows, tile_rows)
    tiles_per_core = pl.cdiv(num_tiles, _NUM_CORE_SPLITS)

    def in_map(c, i):
        # Clamp fully out-of-range blocks (odd split) to the last real block; their
        # contribution is zeroed in-kernel by the row mask.
        t = c * tiles_per_core + i
        return (jnp.minimum(t, num_tiles - 1), 0)

    return tile_rows, tiles_per_core, in_map


def _sse_pallas(pred2d, gt2d):
    n_rows, n_cols = pred2d.shape
    tile_rows, tiles_per_core, in_map = _grid_setup(n_rows, n_cols)

    out = pl.pallas_call(
        functools.partial(_sse_kernel, n_rows=n_rows, tile_rows=tile_rows,
                          tiles_per_core=tiles_per_core),
        out_shape=jax.ShapeDtypeStruct((_NUM_CORE_SPLITS, 1, 128), jnp.float32),
        grid_spec=pltpu.PrefetchScalarGridSpec(
            num_scalar_prefetch=0,
            grid=(_NUM_CORE_SPLITS, tiles_per_core),
            in_specs=[
                pl.BlockSpec((tile_rows, n_cols), in_map),
                pl.BlockSpec((tile_rows, n_cols), in_map),
            ],
            out_specs=pl.BlockSpec((1, 1, 128), lambda c, i: (c, 0, 0)),
            scratch_shapes=[pltpu.VMEM((1, n_cols), jnp.float32)],
        ),
        compiler_params=pltpu.CompilerParams(
            dimension_semantics=("parallel", "arbitrary")),
    )(pred2d, gt2d)
    return jnp.sum(out[:, 0, 0])


def _masked_sse_pallas(pred2d, gt2d, valid2d):
    n_rows, n_cols = pred2d.shape
    tile_rows, tiles_per_core, in_map = _grid_setup(n_rows, n_cols)

    num, den = pl.pallas_call(
        functools.partial(_masked_sse_kernel, n_rows=n_rows, tile_rows=tile_rows,
                          tiles_per_core=tiles_per_core),
        out_shape=(
            jax.ShapeDtypeStruct((_NUM_CORE_SPLITS, 1, 128), jnp.float32),
            jax.ShapeDtypeStruct((_NUM_CORE_SPLITS, 1, 128), jnp.float32),
        ),
        grid_spec=pltpu.PrefetchScalarGridSpec(
            num_scalar_prefetch=0,
            grid=(_NUM_CORE_SPLITS, tiles_per_core),
            in_specs=[
                pl.BlockSpec((tile_rows, n_cols), in_map),
                pl.BlockSpec((tile_rows, n_cols), in_map),
                pl.BlockSpec((tile_rows, n_cols), in_map),   # int8 mask
            ],
            out_specs=[
                pl.BlockSpec((1, 1, 128), lambda c, i: (c, 0, 0)),
                pl.BlockSpec((1, 1, 128), lambda c, i: (c, 0, 0)),
            ],
            scratch_shapes=[
                pltpu.VMEM((1, n_cols), jnp.float32),
                pltpu.VMEM((1, n_cols), jnp.float32),
            ],
        ),
        compiler_params=pltpu.CompilerParams(
            dimension_semantics=("parallel", "arbitrary")),
    )(pred2d, gt2d, valid2d)
    return jnp.sum(num[:, 0, 0]), jnp.sum(den[:, 0, 0])


# ---------------------------------------------------------------------------
# L2 module equivalent
# ---------------------------------------------------------------------------
def l2_forward(pred, gt, valid=None, boundary_ignore=None):
    """Reproduces L2.forward: mean-squared error, optionally boundary-cropped and/or
    weighted by a validity mask (mask may be broadcastable, e.g. (B,1,H,W))."""
    if boundary_ignore:  # treat 0 as no-crop (b=0 would produce empty slices)
        b = boundary_ignore
        pred = pred[..., b:-b, b:-b]
        gt = gt[..., b:-b, b:-b]
        if valid is not None:
            valid = valid[..., b:-b, b:-b]

    n_cols = pred.shape[-1]
    pred2d = pred.reshape(-1, n_cols)
    gt2d = gt.reshape(-1, n_cols)

    if valid is None:
        sse = _sse_pallas(pred2d, gt2d)
        return sse / jnp.float32(pred.size)

    # PyTorch broadcasts `valid` against the per-element squared error and then divides
    # by valid.sum() * (pred.numel()/valid.numel()); that is numerically identical to
    # broadcasting the mask up-front and dividing by the broadcast mask's sum.
    valid_b = jnp.broadcast_to(valid, pred.shape).astype(jnp.int8)
    valid2d = valid_b.reshape(-1, n_cols)
    num, den = _masked_sse_pallas(pred2d, gt2d, valid2d)
    eps = jnp.float32(1e-12)
    return num / (den + eps)


if __name__ == "__main__":
    key = jax.random.PRNGKey(0)
    k1, k2, k3 = jax.random.split(key, 3)

    B, C, H, W = 2, 4, 16, 16
    pred = jax.random.normal(k1, (B, C, H, W), dtype=jnp.float32)
    gt = jax.random.normal(k2, (B, C, H, W), dtype=jnp.float32)
    valid = jax.random.uniform(k3, (B, C, H, W)) > 0.3

    # Plain MSE path.
    mse_plain = jax.block_until_ready(l2_forward(pred, gt))
    ref_plain = jnp.mean((pred - gt) ** 2)
    assert jnp.allclose(mse_plain, ref_plain, rtol=1e-5, atol=1e-6), (mse_plain, ref_plain)

    # Masked path.
    mse_masked = jax.block_until_ready(l2_forward(pred, gt, valid=valid))
    vf = valid.astype(jnp.float32)
    ref_masked = jnp.sum((pred - gt) ** 2 * vf) / (jnp.sum(vf) * 1.0 + 1e-12)
    assert jnp.allclose(mse_masked, ref_masked, rtol=1e-5, atol=1e-6), (mse_masked, ref_masked)

    # Boundary-ignore + masked path.
    mse_crop = jax.block_until_ready(l2_forward(pred, gt, valid=valid, boundary_ignore=2))
    pc, gc, vc = pred[..., 2:-2, 2:-2], gt[..., 2:-2, 2:-2], vf[..., 2:-2, 2:-2]
    ref_crop = jnp.sum((pc - gc) ** 2 * vc) / (jnp.sum(vc) * 1.0 + 1e-12)
    assert jnp.allclose(mse_crop, ref_crop, rtol=1e-5, atol=1e-6), (mse_crop, ref_crop)

    # Broadcastable mask (B,1,H,W) — exercises the elem_ratio semantics.
    valid_b1 = valid[:, :1]
    mse_bcast = jax.block_until_ready(l2_forward(pred, gt, valid=valid_b1))
    vbf = jnp.broadcast_to(valid_b1, pred.shape).astype(jnp.float32)
    elem_ratio = pred.size / valid_b1.size
    ref_bcast = jnp.sum((pred - gt) ** 2 * vbf) / (
        jnp.sum(valid_b1.astype(jnp.float32)) * elem_ratio + 1e-12)
    assert jnp.allclose(mse_bcast, ref_bcast, rtol=1e-5, atol=1e-6), (mse_bcast, ref_bcast)

    print("KERNEL_OK")
</pallas_src>

<mosaic_0001>
module attributes {stable_mosaic.version = 11 : i64} {
  func.func @_sse_kernel(%arg0: i32, %arg1: i32, %arg2: memref<128x16xf32, #tpu.memory_space<vmem>>, %arg3: memref<128x16xf32, #tpu.memory_space<vmem>>, %arg4: memref<1x1x128xf32, #tpu.memory_space<vmem>>, %arg5: memref<1x16xf32, #tpu.memory_space<vmem>>) attributes {dimension_semantics = [#tpu.dimension_semantics<parallel>, #tpu.dimension_semantics<arbitrary>], iteration_bounds = array<i64: 2, 1>, scalar_prefetch = 0 : i64, scratch_operands = 1 : i64, tpu.core_type = #tpu.core_type<tc>, window_params = [{transform_indices = @transform_0, window_bounds = array<i64: 128, 16>}, {transform_indices = @transform_1, window_bounds = array<i64: 128, 16>}, {transform_indices = @transform_2, window_bounds = array<i64: 1, 1, 128>}]} {
    %c0_i32 = arith.constant 0 : i32
    %0 = arith.cmpi eq, %arg1, %c0_i32 : i32
    %1 = arith.extui %0 : i1 to i32
    %c0_i32_0 = arith.constant 0 : i32
    %2 = arith.cmpi ne, %1, %c0_i32_0 : i32
    scf.if %2 {
      %cst_12 = arith.constant 0.000000e+00 : f32
      %27 = vector.broadcast %cst_12 : f32 to vector<1x16xf32>
      %c0_13 = arith.constant 0 : index
      %c0_14 = arith.constant 0 : index
      %28 = vector.load %arg5[%c0_13, %c0_14] : memref<1x16xf32, #tpu.memory_space<vmem>>, vector<1x16xf32>
      tpu.vector_store %arg5[%c0_13, %c0_14], %27 {strides = array<i32>} : memref<1x16xf32, #tpu.memory_space<vmem>>, vector<1x16xf32>,
    } else {
    }
    %c1_i32 = arith.constant 1 : i32
    %3 = arith.muli %arg0, %c1_i32 : i32
    %4 = arith.addi %3, %arg1 : i32
    %c128_i32 = arith.constant 128 : i32
    %5 = arith.muli %4, %c128_i32 : i32
    %6 = tpu.iota {dimensions = array<i32: 0>} : vector<128x1xi32>
    %7 = vector.broadcast %5 : i32 to vector<128x1xi32>
    %8 = arith.addi %6, %7 : vector<128x1xi32>
    %c128_i32_1 = arith.constant 128 : i32
    %9 = vector.broadcast %c128_i32_1 : i32 to vector<128x1xi32>
    %10 = arith.cmpi slt, %8, %9 : vector<128x1xi32>
    %c0 = arith.constant 0 : index
    %c0_2 = arith.constant 0 : index
    %11 = vector.load %arg2[%c0, %c0_2] : memref<128x16xf32, #tpu.memory_space<vmem>>, vector<128x16xf32>
    %c0_3 = arith.constant 0 : index
    %c0_4 = arith.constant 0 : index
    %12 = vector.load %arg3[%c0_3, %c0_4] : memref<128x16xf32, #tpu.memory_space<vmem>>, vector<128x16xf32>
    %13 = arith.subf %11, %12 : vector<128x16xf32>
    %14 = arith.mulf %13, %13 : vector<128x16xf32>
    %cst = arith.constant 0.000000e+00 : f32
    %15 = vector.shape_cast %10 : vector<128x1xi1> to vector<128x1xi1>
    %16 = vector.broadcast %15 : vector<128x1xi1> to vector<128x16xi1>
    %17 = vector.broadcast %cst : f32 to vector<128x16xf32>
    %18 = arith.select %16, %14, %17 : vector<128x16xi1>, vector<128x16xf32>
    %c0_5 = arith.constant 0 : index
    %c0_6 = arith.constant 0 : index
    %19 = vector.load %arg5[%c0_5, %c0_6] : memref<1x16xf32, #tpu.memory_space<vmem>>, vector<1x16xf32>
    %cst_7 = arith.constant dense<0.000000e+00> : vector<16xf32>
    %20 = vector.multi_reduction <add>, %18, %cst_7 [0] : vector<128x16xf32> to vector<16xf32>
    %21 = vector.shape_cast %20 : vector<16xf32> to vector<1x16xf32>
    %22 = arith.addf %19, %21 : vector<1x16xf32>
    %c0_8 = arith.constant 0 : index
    %c0_9 = arith.constant 0 : index
    %23 = vector.load %arg5[%c0_8, %c0_9] : memref<1x16xf32, #tpu.memory_space<vmem>>, vector<1x16xf32>
    tpu.vector_store %arg5[%c0_8, %c0_9], %22 {strides = array<i32>} : memref<1x16xf32, #tpu.memory_space<vmem>>, vector<1x16xf32>,
    %c0_i32_10 = arith.constant 0 : i32
    %24 = arith.cmpi eq, %arg1, %c0_i32_10 : i32
    %25 = arith.extui %24 : i1 to i32
    %c0_i32_11 = arith.constant 0 : i32
    %26 = arith.cmpi ne, %25, %c0_i32_11 : i32
    scf.if %26 {
      %c0_12 = arith.constant 0 : index
      %c0_13 = arith.constant 0 : index
      %27 = vector.load %arg5[%c0_12, %c0_13] : memref<1x16xf32, #tpu.memory_space<vmem>>, vector<1x16xf32>
      %28 = vector.shape_cast %27 : vector<1x16xf32> to vector<1x1x16xf32>
      %cst_14 = arith.constant dense<0.000000e+00> : vector<1xf32>
      %29 = vector.multi_reduction <add>, %28, %cst_14 [1, 2] : vector<1x1x16xf32> to vector<1xf32>
      %30 = vector.shape_cast %29 : vector<1xf32> to vector<1x1x1xf32>
      %31 = vector.extract %30[0, 0, 0] : f32 from vector<1x1x1xf32>
      %32 = vector.broadcast %31 : f32 to vector<1x1x128xf32>
      %c0_15 = arith.constant 0 : index
      %c0_16 = arith.constant 0 : index
      %c0_17 = arith.constant 0 : index
      %33 = vector.load %arg4[%c0_15, %c0_16, %c0_17] : memref<1x1x128xf32, #tpu.memory_space<vmem>>, vector<1x1x128xf32>
      tpu.vector_store %arg4[%c0_15, %c0_16, %c0_17], %32 {strides = array<i32>} : memref<1x1x128xf32, #tpu.memory_space<vmem>>, vector<1x1x128xf32>,
    } else {
    }
    return
  }
  func.func @transform_0(%arg0: i32, %arg1: i32) -> (i32, i32) {
    %c1_i32 = arith.constant 1 : i32
    %0 = arith.muli %arg0, %c1_i32 : i32
    %1 = arith.addi %0, %arg1 : i32
    %c0_i32 = arith.constant 0 : i32
    %2 = arith.minsi %1, %c0_i32 : i32
    %c0_i32_0 = arith.constant 0 : i32
    %c0_i32_1 = arith.constant 0 : i32
    return %2, %c0_i32_0 : i32, i32
  }
  func.func @transform_1(%arg0: i32, %arg1: i32) -> (i32, i32) {
    %c1_i32 = arith.constant 1 : i32
    %0 = arith.muli %arg0, %c1_i32 : i32
    %1 = arith.addi %0, %arg1 : i32
    %c0_i32 = arith.constant 0 : i32
    %2 = arith.minsi %1, %c0_i32 : i32
    %c0_i32_0 = arith.constant 0 : i32
    %c0_i32_1 = arith.constant 0 : i32
    return %2, %c0_i32_0 : i32, i32
  }
  func.func @transform_2(%arg0: i32, %arg1: i32) -> (i32, i32, i32) {
    %c0_i32 = arith.constant 0 : i32
    %c0_i32_0 = arith.constant 0 : i32
    %c0_i32_1 = arith.constant 0 : i32
    return %arg0, %c0_i32, %c0_i32_0 : i32, i32, i32
  }
}

</mosaic_0001>

<llo_original>
// kernel: tpu_custom_call.1
$region0: #{tpu_custom_call.1}
  #allocation0 [shape = 'u32[]', space=smem, size = 0x4, offset = 0x4, fixed_abs, tag = 'smem constant byte address 0x4 - core index']
  #allocation1 [shape = 'u32[144,128]{1,0:T(1,128)}', space=vmem, size = 0x12000, scoped, tag = 'internal scratch']
  #allocation2 [shape = 'f32[1,16]{1,0:T(1,128)}', space=vmem, size = 0x200, scoped, tag = 'scratch operand']
  %s0 = inlined_call_operand.vmem [shape: f32[128,16], index: 0, kind: input, shape index: {}]
  %s1 = inlined_call_operand.vmem [shape: f32[128,16], index: 1, kind: input, shape index: {}]
  %s2 = inlined_call_operand.hbm [shape: f32[2,1,128], index: 2, kind: output, shape index: {}]
  %s3 = sld [smem:[#allocation0]]
  $region49: #{tpu_custom_call.1} parent=0
    _
  %s5 = ssub.s32 1, %s3
  %s6 = scalar_select 0, %s5, %s3
  $region1: #{tpu_custom_call.1} parent=0
    #allocation3 [shape = 'u8[1024]{0}', space=vmem, size = 0x400, scoped, tag = 'output window, operand 0']
    #allocation4 [shape = 's32[2]{0}', space=sflag, size = 0x8, scoped, tag = 'scoped memory for tpu_custom_call.1']
    %7 = vsyncpa [#allocation4], 0
    %s8 = scalar_lea.sflag [#allocation4], 1
    %9 = vsyncpa %s8, 0
    loop: start=0, step=1, limit=4
    $region2: #{tpu_custom_call.1} parent=1 // loop_pre_header
      _
    $region3: #{tpu_custom_call.1} parent=1 // loop_header
      %s11 = sphi 0, %s15
      %p12 = scmp.ge.s32.totalorder %s11, 4
      %s18 = sphi 0, %s30
      %s19 = sphi 0, %s26
      %s20 = sphi 0, %s18
      %s21 = sphi 0, %s19
      %s22 = sphi 0, %s20
      %s23 = sphi 0, %s21
      %s39 = sphi 0, %s41
      %s42 = sphi 0, %s39
      %s43 = sphi 0, %s42
      %s59 = sphi 0, %s43
      %s71 = sphi 0, %s73
      %s74 = sphi 0, %s71
      %s75 = sphi 0, %s74
      %s91 = sphi 0, %s75
      %s97 = sphi 0, %s99
      %s100 = sphi 0, %s97
      %s101 = sphi 0, %s100
      %s117 = sphi 0, %s101
    $region4: #{tpu_custom_call.1} parent=1 // loop_header_branch
      %14 = sbr.rel (%p12) target = $region8
    $region5: #{tpu_custom_call.1} parent=1 // loop_body
      %s16 = ssub.s32 %s11, 1
      %s17 = ssub.s32 %s11, 2
      %s24 = sadd.s32 1, %s19
      %p25 = scmp.ge.s32.totalorder %s24, 1
      %s26 = scalar_select %p25, 0, %s24
      %s27 = sadd.s32 1, %s18
      %s28 = scalar_select %p25, %s27, %s18
      %p29 = scmp.ge.s32.totalorder %s28, 2
      %s30 = scalar_select %p29, 0, %s28
      %s31 = sadd.s32 %s18, %s19
      %p32 = scmp.lt.s32.totalorder %s31, 0
      %s33 = scalar_select %p32, %s31, 0
      %s34 = sadd.s32 %s30, %s26
      %p35 = scmp.lt.s32.totalorder %s34, 0
      %s36 = scalar_select %p35, %s34, 0
      %s37 = ssub.s32 %s33, %s36
      %p38 = scmp.eq.s32.totalorder %s37, 0
      %s40 = sadd.s32 %s39, 1
      %s41 = scalar_select %p38, %s39, %s40
      %p44 = pneg %p38
      %p45 = scmp.eq.s32.totalorder %s11, 1
      %p46 = por %p44, %p45
      %p47 = scmp.ne.s32.totalorder %s39, %s42
      %p48 = scmp.eq.s32.totalorder %s11, 0
      %p49 = por %p47, %p48
      %p50 = scmp.ne.s32.totalorder %s39, %s42
      %p51 = scmp.eq.s32.totalorder %s16, 1
      %p52 = por %p50, %p51
      %p53 = scmp.ne.s32.totalorder %s42, %s43
      %p54 = scmp.eq.s32.totalorder %s16, 0
      %p55 = por %p53, %p54
      %p56 = scmp.ne.s32.totalorder %s42, %s43
      %p57 = scmp.eq.s32.totalorder %s17, 1
      %p58 = por %p56, %p57
      %p60 = scmp.ne.s32.totalorder %s43, %s59
      %p61 = scmp.eq.s32.totalorder %s17, 0
      %p62 = por %p60, %p61
      %s63 = sadd.s32 %s18, %s19
      %p64 = scmp.lt.s32.totalorder %s63, 0
      %s65 = scalar_select %p64, %s63, 0
      %s66 = sadd.s32 %s30, %s26
      %p67 = scmp.lt.s32.totalorder %s66, 0
      %s68 = scalar_select %p67, %s66, 0
      %s69 = ssub.s32 %s65, %s68
      %p70 = scmp.eq.s32.totalorder %s69, 0
      %s72 = sadd.s32 %s71, 1
      %s73 = scalar_select %p70, %s71, %s72
      %p76 = pneg %p70
      %p77 = scmp.eq.s32.totalorder %s11, 1
      %p78 = por %p76, %p77
      %p79 = scmp.ne.s32.totalorder %s71, %s74
      %p80 = scmp.eq.s32.totalorder %s11, 0
      %p81 = por %p79, %p80
      %p82 = scmp.ne.s32.totalorder %s71, %s74
      %p83 = scmp.eq.s32.totalorder %s16, 1
      %p84 = por %p82, %p83
      %p85 = scmp.ne.s32.totalorder %s74, %s75
      %p86 = scmp.eq.s32.totalorder %s16, 0
      %p87 = por %p85, %p86
      %p88 = scmp.ne.s32.totalorder %s74, %s75
      %p89 = scmp.eq.s32.totalorder %s17, 1
      %p90 = por %p88, %p89
      %p92 = scmp.ne.s32.totalorder %s75, %s91
      %p93 = scmp.eq.s32.totalorder %s17, 0
      %p94 = por %p92, %p93
      %s95 = ssub.s32 %s18, %s30
      %p96 = scmp.eq.s32.totalorder %s95, 0
      %s98 = sadd.s32 %s97, 1
      %s99 = scalar_select %p96, %s97, %s98
      %p102 = pneg %p96
      %p103 = scmp.eq.s32.totalorder %s11, 1
      %p104 = por %p102, %p103
      %p105 = scmp.ne.s32.totalorder %s97, %s100
      %p106 = scmp.eq.s32.totalorder %s11, 0
      %p107 = por %p105, %p106
      %p108 = scmp.ne.s32.totalorder %s97, %s100
      %p109 = scmp.eq.s32.totalorder %s16, 1
      %p110 = por %p108, %p109
      %p111 = scmp.ne.s32.totalorder %s100, %s101
      %p112 = scmp.eq.s32.totalorder %s16, 0
      %p113 = por %p111, %p112
      %p114 = scmp.ne.s32.totalorder %s100, %s101
      %p115 = scmp.eq.s32.totalorder %s17, 1
      %p116 = por %p114, %p115
      %p118 = scmp.ne.s32.totalorder %s101, %s117
      %p119 = scmp.eq.s32.totalorder %s17, 0
      %p120 = por %p118, %p119
      %p121 = scmp.le.s32.totalorder 1, %s11
      %p122 = scmp.lt.s32.totalorder %s11, 3
      %p123 = pnand %p121, %p122
      %p124 = pneg %p123
      // Predicated region
      $region9: #{tpu_custom_call.1} parent=5 // pred_check
        _
      $region10: #{tpu_custom_call.1} parent=5 // pred_check_branch
        %126 = sbr.rel (%p123) target = $region12
      $region11: #{tpu_custom_call.1} parent=5 // pred_region
        %s127 = ssub.s32 %s11, 1
      $region12: #{tpu_custom_call.1} parent=5 // pred_fallthru
        _
      %p128 = scmp.lt.s32.totalorder %s11, 2
      // Predicated region
      $region13: #{tpu_custom_call.1} parent=5 // pred_check
        %p129 = pneg %p128
      $region14: #{tpu_custom_call.1} parent=5 // pred_check_branch
        %131 = sbr.rel (%p129) target = $region16
      $region15: #{tpu_custom_call.1} parent=5 // pred_region
        // Predicated region
        $region17: #{tpu_custom_call.1} parent=15 // pred_check
          %p132 = pneg %p49
        $region18: #{tpu_custom_call.1} parent=15 // pred_check_branch
          %134 = sbr.rel (%p132) target = $region20
        $region19: #{tpu_custom_call.1} parent=15 // pred_region
          %s135 = sadd.s32 %s18, %s19
          %p136 = scmp.lt.s32.totalorder %s135, 0
          %s137 = scalar_select %p136, %s135, 0
          %s138 = smul.u32 16, %s137
          %p139 = scmp.lt.s32.totalorder %s138, 15
          %s140 = scalar_select %p139, %s138, 15
          %s141 = smul.addr %s140, 8
          %s142 = scalar_lea.vmem %s0, %s141
          %s143 = sadd.s32 %s18, %s19
          %p144 = scmp.lt.s32.totalorder %s143, 0
          %s145 = scalar_select %p144, %s143, 0
          %s146 = smul.u32 16, %s145
        $region20: #{tpu_custom_call.1} parent=15 // pred_fallthru
          _
        // Predicated region
        $region21: #{tpu_custom_call.1} parent=15 // pred_check
          %p147 = pneg %p81
        $region22: #{tpu_custom_call.1} parent=15 // pred_check_branch
          %149 = sbr.rel (%p147) target = $region24
        $region23: #{tpu_custom_call.1} parent=15 // pred_region
          %s150 = sadd.s32 %s18, %s19
          %p151 = scmp.lt.s32.totalorder %s150, 0
          %s152 = scalar_select %p151, %s150, 0
          %s153 = smul.u32 16, %s152
          %p154 = scmp.lt.s32.totalorder %s153, 15
          %s155 = scalar_select %p154, %s153, 15
          %s156 = smul.addr %s155, 8
          %s157 = scalar_lea.vmem %s1, %s156
          %s158 = sadd.s32 %s18, %s19
          %p159 = scmp.lt.s32.totalorder %s158, 0
          %s160 = scalar_select %p159, %s158, 0
          %s161 = smul.u32 16, %s160
        $region24: #{tpu_custom_call.1} parent=15 // pred_fallthru
          _
      $region16: #{tpu_custom_call.1} parent=5 // pred_fallthru
        _
      %p162 = scmp.le.s32.totalorder 1, %s11
      %p163 = scmp.lt.s32.totalorder %s11, 3
      %p164 = pnand %p162, %p163
      %p165 = pneg %p164
      // Predicated region
      $region25: #{tpu_custom_call.1} parent=5 // pred_check
        _
      $region26: #{tpu_custom_call.1} parent=5 // pred_check_branch
        %167 = sbr.rel (%p164) target = $region28
      $region27: #{tpu_custom_call.1} parent=5 // pred_region
        %s168 = ssub.s32 %s11, 1
        %s169 = sadd.s32 %s20, %s21
        %p170 = scmp.lt.s32.totalorder %s169, 0
        %s171 = scalar_select %p170, %s169, 0
        %s172 = smul.u32 16, %s171
        %p173 = scmp.lt.s32.totalorder %s172, 15
        %s174 = scalar_select %p173, %s172, 15
        %s175 = smul.addr %s174, 8
        %s176 = scalar_lea.vmem %s0, %s175
        %p177 = pneg %p55
        %p178 = pneg %p52
        %s179 = sadd.s32 %s20, %s21
        %p180 = scmp.lt.s32.totalorder %s179, 0
        %s181 = scalar_select %p180, %s179, 0
        %s182 = smul.u32 16, %s181
        %p183 = scmp.lt.s32.totalorder %s182, 15
        %s184 = scalar_select %p183, %s182, 15
        %s185 = smul.addr %s184, 8
        %s186 = scalar_lea.vmem %s1, %s185
        %p187 = pneg %p87
        %p188 = pneg %p84
        %p189 = pneg %p113
        %p190 = pneg %p110
        %s191 = sand.u32 %s100, 1
        %s192 = scalar_lea.sflag [#allocation4], %s191
        %s193 = sand.u32 %s100, 1
        %s194 = scalar_lea.vmem [#allocation3], %s193
        %s195 = sadd.s32 %s20, %s21
        %p196 = scmp.lt.s32.totalorder %s195, 0
        %s197 = scalar_select %p196, %s195, 0
        %s198 = smul.u32 16, %s197
        %p199 = scmp.lt.s32.totalorder %s198, 15
        %s200 = scalar_select %p199, %s198, 15
        %s201 = smul.addr %s200, 8
        %s202 = scalar_lea.vmem %s0, %s201
        %s203 = sadd.s32 %s20, %s21
        %p204 = scmp.lt.s32.totalorder %s203, 0
        %s205 = scalar_select %p204, %s203, 0
        %s206 = smul.u32 16, %s205
        %s207 = sadd.s32 %s20, %s21
        %p208 = scmp.lt.s32.totalorder %s207, 0
        %s209 = scalar_select %p208, %s207, 0
        %s210 = smul.u32 16, %s209
        %p211 = scmp.lt.s32.totalorder %s210, 15
        %s212 = scalar_select %p211, %s210, 15
        %s213 = smul.addr %s212, 8
        %s214 = scalar_lea.vmem %s1, %s213
        %s215 = sadd.s32 %s20, %s21
        %p216 = scmp.lt.s32.totalorder %s215, 0
        %s217 = scalar_select %p216, %s215, 0
        %s218 = smul.u32 16, %s217
        %p219 = scmp.eq.s32.totalorder %s21, 0
        // Predicated region
        $region29: #{tpu_custom_call.1} parent=27 // pred_check
          %p220 = pneg %p219
        $region30: #{tpu_custom_call.1} parent=27 // pred_check_branch
          %222 = sbr.rel (%p220) target = $region32
        $region31: #{tpu_custom_call.1} parent=27 // pred_region
          %vm223 = vcmask 122880
          %224 = vst.msk [vmem:[#allocation2] sm:$0x1] %vm223, 0.0
        $region32: #{tpu_custom_call.1} parent=27 // pred_fallthru
          _
        %s225 = sadd.s32 %s20, %s21
        %s226 = smul.u32 %s225, 128
        %v227 = vlaneseq
        %v228 = vshrl.u32 %v227, 7
        %v229 = vadd.s32 %v228, 8
        %v230 = vadd.s32 %v228, 16
        %v231 = vadd.s32 %v228, 24
        %v232 = vadd.s32 %v228, 32
        %v233 = vadd.s32 %v228, 40
        %v234 = vadd.s32 %v228, 48
        %v235 = vadd.s32 %v228, 56
        %v236 = vadd.s32 %v228, 64
        %v237 = vadd.s32 %v228, 72
        %v238 = vadd.s32 %v228, 80
        %v239 = vadd.s32 %v228, 88
        %v240 = vadd.s32 %v228, 96
        %v241 = vadd.s32 %v228, 104
        %v242 = vadd.s32 %v228, 112
        %v243 = vadd.s32 %v228, 120
        %v244 = vstv %s226
        %v245 = vadd.s32 %v228, %v244
        %v246 = vadd.s32 %v229, %v244
        %v247 = vadd.s32 %v230, %v244
        %v248 = vadd.s32 %v231, %v244
        %v249 = vadd.s32 %v232, %v244
        %v250 = vadd.s32 %v233, %v244
        %v251 = vadd.s32 %v234, %v244
        %v252 = vadd.s32 %v235, %v244
        %v253 = vadd.s32 %v236, %v244
        %v254 = vadd.s32 %v237, %v244
        %v255 = vadd.s32 %v238, %v244
        %v256 = vadd.s32 %v239, %v244
        %v257 = vadd.s32 %v240, %v244
        %v258 = vadd.s32 %v241, %v244
        %v259 = vadd.s32 %v242, %v244
        %v260 = vadd.s32 %v243, %v244
        %vm261 = vcmp.lt.s32.totalorder %v245, 128
        %vm262 = vcmp.lt.s32.totalorder %v246, 128
        %vm263 = vcmp.lt.s32.totalorder %v247, 128
        %vm264 = vcmp.lt.s32.totalorder %v248, 128
        %vm265 = vcmp.lt.s32.totalorder %v249, 128
        %vm266 = vcmp.lt.s32.totalorder %v250, 128
        %vm267 = vcmp.lt.s32.totalorder %v251, 128
        %vm268 = vcmp.lt.s32.totalorder %v252, 128
        %vm269 = vcmp.lt.s32.totalorder %v253, 128
        %vm270 = vcmp.lt.s32.totalorder %v254, 128
        %vm271 = vcmp.lt.s32.totalorder %v255, 128
        %vm272 = vcmp.lt.s32.totalorder %v256, 128
        %vm273 = vcmp.lt.s32.totalorder %v257, 128
        %vm274 = vcmp.lt.s32.totalorder %v258, 128
        %vm275 = vcmp.lt.s32.totalorder %v259, 128
        %vm276 = vcmp.lt.s32.totalorder %v260, 128
        %v277 = vld [vmem:[%s202] sm:$0xff]
        %v278 = vld [vmem:[%s202 + $0x8] sm:$0xff]
        %v279 = vld [vmem:[%s202 + $0x10] sm:$0xff]
        %v280 = vld [vmem:[%s202 + $0x18] sm:$0xff]
        %v281 = vld [vmem:[%s202 + $0x20] sm:$0xff]
        %v282 = vld [vmem:[%s202 + $0x28] sm:$0xff]
        %v283 = vld [vmem:[%s202 + $0x30] sm:$0xff]
        %v284 = vld [vmem:[%s202 + $0x38] sm:$0xff]
        %v285 = vld [vmem:[%s202 + $0x40] sm:$0xff]
        %v286 = vld [vmem:[%s202 + $0x48] sm:$0xff]
        %v287 = vld [vmem:[%s202 + $0x50] sm:$0xff]
        %v288 = vld [vmem:[%s202 + $0x58] sm:$0xff]
        %v289 = vld [vmem:[%s202 + $0x60] sm:$0xff]
        %v290 = vld [vmem:[%s202 + $0x68] sm:$0xff]
        %v291 = vld [vmem:[%s202 + $0x70] sm:$0xff]
        %v292 = vld [vmem:[%s202 + $0x78] sm:$0xff]
        %v293 = vld [vmem:[%s214] sm:$0xff]
        %v294 = vld [vmem:[%s214 + $0x8] sm:$0xff]
        %v295 = vld [vmem:[%s214 + $0x10] sm:$0xff]
        %v296 = vld [vmem:[%s214 + $0x18] sm:$0xff]
        %v297 = vld [vmem:[%s214 + $0x20] sm:$0xff]
        %v298 = vld [vmem:[%s214 + $0x28] sm:$0xff]
        %v299 = vld [vmem:[%s214 + $0x30] sm:$0xff]
        %v300 = vld [vmem:[%s214 + $0x38] sm:$0xff]
        %v301 = vld [vmem:[%s214 + $0x40] sm:$0xff]
        %v302 = vld [vmem:[%s214 + $0x48] sm:$0xff]
        %v303 = vld [vmem:[%s214 + $0x50] sm:$0xff]
        %v304 = vld [vmem:[%s214 + $0x58] sm:$0xff]
        %v305 = vld [vmem:[%s214 + $0x60] sm:$0xff]
        %v306 = vld [vmem:[%s214 + $0x68] sm:$0xff]
        %v307 = vld [vmem:[%s214 + $0x70] sm:$0xff]
        %v308 = vld [vmem:[%s214 + $0x78] sm:$0xff]
        %v309 = vsub.f32 %v277, %v293
        %v310 = vsub.f32 %v278, %v294
        %v311 = vsub.f32 %v279, %v295
        %v312 = vsub.f32 %v280, %v296
        %v313 = vsub.f32 %v281, %v297
        %v314 = vsub.f32 %v282, %v298
        %v315 = vsub.f32 %v283, %v299
        %v316 = vsub.f32 %v284, %v300
        %v317 = vsub.f32 %v285, %v301
        %v318 = vsub.f32 %v286, %v302
        %v319 = vsub.f32 %v287, %v303
        %v320 = vsub.f32 %v288, %v304
        %v321 = vsub.f32 %v289, %v305
        %v322 = vsub.f32 %v290, %v306
        %v323 = vsub.f32 %v291, %v307
        %v324 = vsub.f32 %v292, %v308
        %v325 = vmul.f32 %v309, %v309
        %v326 = vmul.f32 %v310, %v310
        %v327 = vmul.f32 %v311, %v311
        %v328 = vmul.f32 %v312, %v312
        %v329 = vmul.f32 %v313, %v313
        %v330 = vmul.f32 %v314, %v314
        %v331 = vmul.f32 %v315, %v315
        %v332 = vmul.f32 %v316, %v316
        %v333 = vmul.f32 %v317, %v317
        %v334 = vmul.f32 %v318, %v318
        %v335 = vmul.f32 %v319, %v319
        %v336 = vmul.f32 %v320, %v320
        %v337 = vmul.f32 %v321, %v321
        %v338 = vmul.f32 %v322, %v322
        %v339 = vmul.f32 %v323, %v323
        %v340 = vmul.f32 %v324, %v324
        %v341 = vsel %vm261, 1, 0
        %v342 = vsel %vm262, 1, 0
        %v343 = vsel %vm263, 1, 0
        %v344 = vsel %vm264, 1, 0
        %v345 = vsel %vm265, 1, 0
        %v346 = vsel %vm266, 1, 0
        %v347 = vsel %vm267, 1, 0
        %v348 = vsel %vm268, 1, 0
        %v349 = vsel %vm269, 1, 0
        %v350 = vsel %vm270, 1, 0
        %v351 = vsel %vm271, 1, 0
        %v352 = vsel %vm272, 1, 0
        %v353 = vsel %vm273, 1, 0
        %v354 = vsel %vm274, 1, 0
        %v355 = vsel %vm275, 1, 0
        %v356 = vsel %vm276, 1, 0
        %vm357 = vcmp.eq.s32.totalorder %v341, 1
        %vm358 = vcmp.eq.s32.totalorder %v342, 1
        %vm359 = vcmp.eq.s32.totalorder %v343, 1
        %vm360 = vcmp.eq.s32.totalorder %v344, 1
        %vm361 = vcmp.eq.s32.totalorder %v345, 1
        %vm362 = vcmp.eq.s32.totalorder %v346, 1
        %vm363 = vcmp.eq.s32.totalorder %v347, 1
        %vm364 = vcmp.eq.s32.totalorder %v348, 1
        %vm365 = vcmp.eq.s32.totalorder %v349, 1
        %vm366 = vcmp.eq.s32.totalorder %v350, 1
        %vm367 = vcmp.eq.s32.totalorder %v351, 1
        %vm368 = vcmp.eq.s32.totalorder %v352, 1
        %vm369 = vcmp.eq.s32.totalorder %v353, 1
        %vm370 = vcmp.eq.s32.totalorder %v354, 1
        %vm371 = vcmp.eq.s32.totalorder %v355, 1
        %vm372 = vcmp.eq.s32.totalorder %v356, 1
        %v373 = vsel %vm357, %v325, 0.0
        %v374 = vsel %vm358, %v326, 0.0
        %v375 = vsel %vm359, %v327, 0.0
        %v376 = vsel %vm360, %v328, 0.0
        %v377 = vsel %vm361, %v329, 0.0
        %v378 = vsel %vm362, %v330, 0.0
        %v379 = vsel %vm363, %v331, 0.0
        %v380 = vsel %vm364, %v332, 0.0
        %v381 = vsel %vm365, %v333, 0.0
        %v382 = vsel %vm366, %v334, 0.0
        %v383 = vsel %vm367, %v335, 0.0
        %v384 = vsel %vm368, %v336, 0.0
        %v385 = vsel %vm369, %v337, 0.0
        %v386 = vsel %vm370, %v338, 0.0
        %v387 = vsel %vm371, %v339, 0.0
        %v388 = vsel %vm372, %v340, 0.0
        %v389 = vld [vmem:[#allocation2] sm:$0x1]
        %vm390 = vcmask 130048
        %v391 = vsel %vm390, %v373, 0.0
        %v392 = vsel %vm390, %v374, 0.0
        %v393 = vadd.f32 %v391, %v392
        %v394 = vsel %vm390, %v375, 0.0
        %v395 = vadd.f32 %v393, %v394
        %v396 = vsel %vm390, %v376, 0.0
        %v397 = vadd.f32 %v395, %v396
        %v398 = vsel %vm390, %v377, 0.0
        %v399 = vadd.f32 %v397, %v398
        %v400 = vsel %vm390, %v378, 0.0
        %v401 = vadd.f32 %v399, %v400
        %v402 = vsel %vm390, %v379, 0.0
        %v403 = vadd.f32 %v401, %v402
        %v404 = vsel %vm390, %v380, 0.0
        %v405 = vadd.f32 %v403, %v404
        %v406 = vsel %vm390, %v381, 0.0
        %v407 = vadd.f32 %v405, %v406
        %v408 = vsel %vm390, %v382, 0.0
        %v409 = vadd.f32 %v407, %v408
        %v410 = vsel %vm390, %v383, 0.0
        %v411 = vadd.f32 %v409, %v410
        %v412 = vsel %vm390, %v384, 0.0
        %v413 = vadd.f32 %v411, %v412
        %v414 = vsel %vm390, %v385, 0.0
        %v415 = vadd.f32 %v413, %v414
        %v416 = vsel %vm390, %v386, 0.0
        %v417 = vadd.f32 %v415, %v416
        %v418 = vsel %vm390, %v387, 0.0
        %v419 = vadd.f32 %v417, %v418
        %v420 = vsel %vm390, %v388, 0.0
        %v421 = vadd.f32 %v419, %v420
        %v422 = vrot.slane %v421, 4
        %v423 = vadd.f32 %v421, %v422
        %v424 = vrot.slane %v423, 2
        %v425 = vadd.f32 %v423, %v424
        %v426 = vrot.slane %v425, 1
        %v427 = vadd.f32 %v425, %v426
        %v428 = vadd.f32 %v389, %v427
        %vm429 = vcmask 122880
        %430 = vst.msk [vmem:[#allocation2] sm:$0x1] %vm429, %v428
        // Predicated region
        $region33: #{tpu_custom_call.1} parent=27 // pred_check
          %p431 = pneg %p219
        $region34: #{tpu_custom_call.1} parent=27 // pred_check_branch
          %433 = sbr.rel (%p431) target = $region36
        $region35: #{tpu_custom_call.1} parent=27 // pred_region
          %v434 = vld [vmem:[#allocation2] sm:$0x1]
          %v435 = vsel %vm429, %v434, 0.0
          %436 = vadd.xlane.f32.xlu0 %v435
          %v437 = vpop.xlane.xlu0 %436
          %v438 = vrot.slane %v437, 4
          %v439 = vadd.f32 %v437, %v438
          %v440 = vrot.slane %v439, 2
          %v441 = vadd.f32 %v439, %v440
          %v442 = vrot.slane %v441, 1
          %v443 = vadd.f32 %v441, %v442
          %s444 = vtos %v443
          %v445 = vstv %s444
          %446 = vst [vmem:[%s194] sm:$0x1] %v445
        $region36: #{tpu_custom_call.1} parent=27 // pred_fallthru
          _
        %s447 = sand.u32 %s100, 1
        %s448 = scalar_lea.sflag [#allocation4], %s447
        %s449 = sand.u32 %s100, 1
        %s450 = scalar_lea.vmem [#allocation3], %s449
        // Predicated region
        $region37: #{tpu_custom_call.1} parent=27 // pred_check
          %p451 = pneg %p110
        $region38: #{tpu_custom_call.1} parent=27 // pred_check_branch
          %453 = sbr.rel (%p451) target = $region40
        $region39: #{tpu_custom_call.1} parent=27 // pred_region
          %s455 = ssub.s32 16, 16
          %456 = vsyncadd %s448, %s455
          %s457 = smul.addr %s20, 16
          %s458 = scalar_lea.hbm %s2, %s457
          %s460 = sshll.u32 %s450, 4
          %s461 = int_to_ptr.vmem [resolvable:$true] %s460
          %463 = dma.vmem_to_hbm [thread:$0]  %s461, 16, %s458, %s448
        $region40: #{tpu_custom_call.1} parent=27 // pred_fallthru
          _
      $region28: #{tpu_custom_call.1} parent=5 // pred_fallthru
        _
      %p464 = scmp.le.s32.totalorder 2, %s11
      // Predicated region
      $region41: #{tpu_custom_call.1} parent=5 // pred_check
        %p465 = pneg %p464
      $region42: #{tpu_custom_call.1} parent=5 // pred_check_branch
        %467 = sbr.rel (%p465) target = $region44
      $region43: #{tpu_custom_call.1} parent=5 // pred_region
        %s468 = ssub.s32 %s11, 2
        // Predicated region
        $region45: #{tpu_custom_call.1} parent=43 // pred_check
          %p469 = pneg %p116
        $region46: #{tpu_custom_call.1} parent=43 // pred_check_branch
          %471 = sbr.rel (%p469) target = $region48
        $region47: #{tpu_custom_call.1} parent=43 // pred_region
          %s472 = sand.u32 %s101, 1
          %s473 = scalar_lea.sflag [#allocation4], %s472
          %s474 = sand.u32 %s101, 1
          %s475 = scalar_lea.vmem [#allocation3], %s474
          %476 = dma.done %s473, 16
        $region48: #{tpu_custom_call.1} parent=43 // pred_fallthru
          _
      $region44: #{tpu_custom_call.1} parent=5 // pred_fallthru
        _
    $region6: #{tpu_custom_call.1} parent=1 // loop_footer
      %s15 = sadd.s32 1, %s11
    $region7: #{tpu_custom_call.1} parent=1 // loop_footer_branch
      %10 = sbr.rel target = $region3
    $region8: #{tpu_custom_call.1} parent=1 // loop_exit
      _
    %477 = vsyncpa [#allocation4], 1
    %s478 = scalar_lea.sflag [#allocation4], 1
    %479 = vsyncpa %s478, 1

</llo_original>
